<compile_context>
chip_gen: v5e
topology: v5e:2x2
jax: 0.10.0
libtpu: 0.0.40
codegen_flags: <defaults>
</compile_context>

<pallas_src>
import jax
import jax.numpy as jnp
from jax.experimental import pallas as pl
from jax.experimental.pallas import tpu as pltpu

LANE = 128     # TPU lane width: last dims padded to a multiple of this
SUBTILE = 16   # bf16-friendly sublane multiple for batch tiles


def _round_up(x, m):
    return (x + m - 1) // m * m


def _incnet_kernel(x_ref,
                   w1_ref, b1_ref,
                   w2_ref, b2_ref,
                   w3_ref, b3_ref,
                   wfc_ref, bfc_ref,
                   feat_ref, logits_ref):
    # Hidden layer 1: Linear (bf16 x bf16 -> f32 accumulate) + ReLU (f32).
    x = x_ref[...].astype(jnp.bfloat16)
    h = jnp.dot(x, w1_ref[...], preferred_element_type=jnp.float32)
    h = jnp.maximum(h + b1_ref[...], 0.0)
    # Hidden layer 2: Linear + ReLU.
    h = jnp.dot(h.astype(jnp.bfloat16), w2_ref[...],
                preferred_element_type=jnp.float32)
    h = jnp.maximum(h + b2_ref[...], 0.0)
    # Backbone output projection (no activation) -> features (stored as bf16).
    feat = jnp.dot(h.astype(jnp.bfloat16), w3_ref[...],
                   preferred_element_type=jnp.float32) + b3_ref[...]
    feat_bf = feat.astype(jnp.bfloat16)
    feat_ref[...] = feat_bf
    # Incremental classifier head: logits = feat @ Wfc + bfc (f32 out).
    logits_ref[...] = (
        jnp.dot(feat_bf, wfc_ref[...], preferred_element_type=jnp.float32)
        + bfc_ref[...]
    )


def prepare_params(params):
    """One-time: pad weights/biases to lane multiples and cast matmul operands
    to bf16.  Cache the result; incremental_net_forward only touches x per call."""
    in_dim, hid_dim = params["w1"].shape
    nb_classes = params["wfc"].shape[1]
    in_p = _round_up(in_dim, LANE)
    hid_p = _round_up(hid_dim, LANE)
    cls_p = _round_up(nb_classes, LANE)

    def pad2(a, rows, cols, dtype):
        a = a.astype(dtype)
        if a.shape != (rows, cols):
            a = jnp.pad(a, ((0, rows - a.shape[0]), (0, cols - a.shape[1])))
        return a

    return {
        "w1": pad2(params["w1"], in_p, hid_p, jnp.bfloat16),
        "b1": pad2(params["b1"], 1, hid_p, jnp.float32),
        "w2": pad2(params["w2"], hid_p, hid_p, jnp.bfloat16),
        "b2": pad2(params["b2"], 1, hid_p, jnp.float32),
        "w3": pad2(params["w3"], hid_p, in_p, jnp.bfloat16),
        "b3": pad2(params["b3"], 1, in_p, jnp.float32),
        "wfc": pad2(params["wfc"], in_p, cls_p, jnp.bfloat16),
        "bfc": pad2(params["bfc"], 1, cls_p, jnp.float32),
        "dims": (in_dim, hid_dim, nb_classes, in_p, hid_p, cls_p),
    }


def incremental_net_forward(x, prepped, *, batch_tile=512):
    """IncrementalNet forward in one Pallas call.

    x: (B, in_dim) float32 activations.
    prepped: output of prepare_params (padded / bf16 weights; reuse across calls).
    """
    B, in_dim = x.shape
    p_in_dim, hid_dim, nb_classes, in_p, hid_p, cls_p = prepped["dims"]
    assert in_dim == p_in_dim, "x feature dim does not match prepared params"

    # Batch tiling: 512-row tiles for large B (fills the 256-wide MXU on
    # v6e/v7x, amortizes ~0.35us/step); for small B pick a tile that still
    # yields >=2 grid steps when possible so both v7x TensorCores get work.
    if B > batch_tile:
        tb = batch_tile
    else:
        tb = max(SUBTILE, _round_up((B + 1) // 2, SUBTILE))
        tb = min(tb, _round_up(B, SUBTILE))
    b_pad = _round_up(B, tb)
    grid = (b_pad // tb,)

    # Only x is prepared per call.  Pad (fused with the bf16 cast) only when the
    # logical shape is ragged; otherwise hand f32 x straight to the kernel and
    # cast inside VMEM (avoids an extra HBM pass over the activations).
    if (B, in_dim) != (b_pad, in_p):
        x_in = jnp.pad(x.astype(jnp.bfloat16),
                       ((0, b_pad - B), (0, in_p - in_dim)))
    else:
        x_in = x

    def row_spec(shape):     # tiled along batch, double-buffered by default
        return pl.BlockSpec(shape, lambda i: (i, 0))

    def const_spec(shape):   # VMEM-resident across all steps, single-buffered
        return pl.BlockSpec(shape, lambda i: (0, 0),
                            pipeline_mode=pl.Buffered(1))

    # --- VMEM budget: resident weights (1x) + double-buffered row tiles. ---
    x_elt = jnp.dtype(x_in.dtype).itemsize
    weight_bytes = (2 * (in_p * hid_p + hid_p * hid_p + hid_p * in_p
                         + in_p * cls_p)
                    + 4 * (2 * hid_p + in_p + cls_p))
    tile_bytes = (2 * tb * in_p * x_elt      # x tile (double-buffered)
                  + 2 * tb * in_p * 2        # bf16 feature tile
                  + 2 * tb * cls_p * 4       # f32 logits tile
                  + 2 * tb * hid_p * 4)      # intermediate activations
    needed = weight_bytes + tile_bytes
    try:
        vmem_cap = int(pltpu.get_tpu_info().vmem_capacity_bytes)
    except Exception:
        vmem_cap = 64 << 20   # v7x per-core VMEM; safe floor on all chips
    vmem_limit = max(32 << 20, 2 * needed + (8 << 20))
    vmem_limit = int(min(vmem_limit, int(0.8 * vmem_cap)))

    flops = 2 * b_pad * (in_p * hid_p + hid_p * hid_p + hid_p * in_p
                         + in_p * cls_p)
    bytes_accessed = (b_pad * in_p * x_elt + weight_bytes
                      + b_pad * in_p * 2 + b_pad * cls_p * 4)

    feat_pad, logits_pad = pl.pallas_call(
        _incnet_kernel,
        out_shape=(
            jax.ShapeDtypeStruct((b_pad, in_p), jnp.bfloat16),
            jax.ShapeDtypeStruct((b_pad, cls_p), jnp.float32),
        ),
        grid=grid,
        in_specs=[
            row_spec((tb, in_p)),
            const_spec((in_p, hid_p)), const_spec((1, hid_p)),
            const_spec((hid_p, hid_p)), const_spec((1, hid_p)),
            const_spec((hid_p, in_p)), const_spec((1, in_p)),
            const_spec((in_p, cls_p)), const_spec((1, cls_p)),
        ],
        out_specs=(
            row_spec((tb, in_p)),
            row_spec((tb, cls_p)),
        ),
        compiler_params=pltpu.CompilerParams(
            dimension_semantics=("parallel",),
            vmem_limit_bytes=vmem_limit,
        ),
        cost_estimate=pl.CostEstimate(
            flops=flops, transcendentals=0, bytes_accessed=bytes_accessed),
    )(x_in, prepped["w1"], prepped["b1"], prepped["w2"], prepped["b2"],
      prepped["w3"], prepped["b3"], prepped["wfc"], prepped["bfc"])

    # Slice padded slabs back to logical shapes.
    feats = feat_pad[:B, :in_dim]
    logits = logits_pad[:B, :nb_classes]
    # Mirror the PyTorch dict output: out = fc(features); out.update(backbone_out)
    return {"logits": logits, "features": feats, "fmaps": []}


def init_params(key, in_dim, hid_dim, nb_classes):
    """Deterministic synthetic weights. PyTorch Linear weight is (out, in);
    built in that convention then transposed to (in, out) for the kernel."""
    ks = jax.random.split(key, 8)

    def linear(kw, kb, fan_in, fan_out):
        w = jax.random.normal(kw, (fan_out, fan_in), jnp.float32) * (1.0 / jnp.sqrt(fan_in))
        b = jax.random.normal(kb, (fan_out,), jnp.float32) * 0.01
        return w.T, b.reshape(1, fan_out)  # pre-transposed for x @ W

    w1, b1 = linear(ks[0], ks[1], in_dim, hid_dim)
    w2, b2 = linear(ks[2], ks[3], hid_dim, hid_dim)
    w3, b3 = linear(ks[4], ks[5], hid_dim, in_dim)       # backbone out_dim == in_dim
    wfc, bfc = linear(ks[6], ks[7], in_dim, nb_classes)  # SimpleLinear(feature_dim, nb_classes)
    return {
        "w1": w1, "b1": b1,
        "w2": w2, "b2": b2,
        "w3": w3, "b3": b3,
        "wfc": wfc, "bfc": bfc,
    }


if __name__ == "__main__":
    # Small shapes implied by the FCNet backbone args:
    #   in_dim=32, fc_hid_dim=64, fc_nr_hid=2, bias=True; nb_classes=10; batch=8.
    B, in_dim, hid_dim, nb_classes = 8, 32, 64, 10

    key = jax.random.PRNGKey(0)
    kx, kp = jax.random.split(key)
    x = jax.random.normal(kx, (B, in_dim), jnp.float32)
    params = init_params(kp, in_dim, hid_dim, nb_classes)

    # One-time weight preparation (cache and reuse across all forward calls).
    prepped = prepare_params(params)

    out = incremental_net_forward(x, prepped)
    jax.block_until_ready(out["logits"])
    jax.block_until_ready(out["features"])

    # Plain-JAX reference with the same bf16 rounding on matmul operands and
    # f32 accumulation, matching the kernel's numerics.
    def bf(a):
        return a.astype(jnp.bfloat16).astype(jnp.float32)

    def mm(a, b):
        return jax.lax.dot(bf(a), bf(b), precision=jax.lax.Precision.HIGHEST,
                           preferred_element_type=jnp.float32)

    h = jnp.maximum(mm(x, params["w1"]) + params["b1"], 0.0)
    h = jnp.maximum(mm(h, params["w2"]) + params["b2"], 0.0)
    feat_ref = mm(h, params["w3"]) + params["b3"]
    logits_ref = mm(feat_ref, params["wfc"]) + params["bfc"]

    assert out["features"].shape == (B, in_dim)
    assert out["features"].dtype == jnp.bfloat16
    assert out["logits"].shape == (B, nb_classes)
    feats_f32 = out["features"].astype(jnp.float32)
    assert jnp.allclose(feats_f32, bf(feat_ref), atol=3e-2, rtol=3e-2)
    assert jnp.allclose(out["logits"], logits_ref, atol=3e-2, rtol=3e-2)

    print("KERNEL_OK")
</pallas_src>

<mosaic_0001>
module attributes {stable_mosaic.version = 11 : i64} {
  func.func @_incnet_kernel(%arg0: i32, %arg1: memref<16x128xbf16, #tpu.memory_space<vmem>>, %arg2: memref<128x128xbf16, #tpu.memory_space<vmem>>, %arg3: memref<1x128xf32, #tpu.memory_space<vmem>>, %arg4: memref<128x128xbf16, #tpu.memory_space<vmem>>, %arg5: memref<1x128xf32, #tpu.memory_space<vmem>>, %arg6: memref<128x128xbf16, #tpu.memory_space<vmem>>, %arg7: memref<1x128xf32, #tpu.memory_space<vmem>>, %arg8: memref<128x128xbf16, #tpu.memory_space<vmem>>, %arg9: memref<1x128xf32, #tpu.memory_space<vmem>>, %arg10: memref<16x128xbf16, #tpu.memory_space<vmem>>, %arg11: memref<16x128xf32, #tpu.memory_space<vmem>>) attributes {dimension_semantics = [#tpu.dimension_semantics<parallel>], iteration_bounds = array<i64: 1>, scalar_prefetch = 0 : i64, scratch_operands = 0 : i64, tpu.core_type = #tpu.core_type<tc>, window_params = [{transform_indices = @transform_0, window_bounds = array<i64: 16, 128>}, {pipeline_mode = #tpu.pipeline_mode<synchronous>, transform_indices = @transform_1, window_bounds = array<i64: 128, 128>}, {pipeline_mode = #tpu.pipeline_mode<synchronous>, transform_indices = @transform_2, window_bounds = array<i64: 1, 128>}, {pipeline_mode = #tpu.pipeline_mode<synchronous>, transform_indices = @transform_3, window_bounds = array<i64: 128, 128>}, {pipeline_mode = #tpu.pipeline_mode<synchronous>, transform_indices = @transform_4, window_bounds = array<i64: 1, 128>}, {pipeline_mode = #tpu.pipeline_mode<synchronous>, transform_indices = @transform_5, window_bounds = array<i64: 128, 128>}, {pipeline_mode = #tpu.pipeline_mode<synchronous>, transform_indices = @transform_6, window_bounds = array<i64: 1, 128>}, {pipeline_mode = #tpu.pipeline_mode<synchronous>, transform_indices = @transform_7, window_bounds = array<i64: 128, 128>}, {pipeline_mode = #tpu.pipeline_mode<synchronous>, transform_indices = @transform_8, window_bounds = array<i64: 1, 128>}, {transform_indices = @transform_9, window_bounds = array<i64: 16, 128>}, {transform_indices = @transform_10, window_bounds = array<i64: 16, 128>}]} {
    %c0 = arith.constant 0 : index
    %c0_0 = arith.constant 0 : index
    %0 = vector.load %arg1[%c0, %c0_0] : memref<16x128xbf16, #tpu.memory_space<vmem>>, vector<16x128xbf16>
    %c0_1 = arith.constant 0 : index
    %c0_2 = arith.constant 0 : index
    %1 = vector.load %arg2[%c0_1, %c0_2] : memref<128x128xbf16, #tpu.memory_space<vmem>>, vector<128x128xbf16>
    %cst = arith.constant dense<0.000000e+00> : vector<16x128xf32>
    %2 = tpu.matmul %0, %1, %cst {dimension_numbers = #tpu.dot_dimension_numbers<[1], [0], [0], [1], [0, 0, 1, 1], [], []>} : vector<16x128xbf16>, vector<128x128xbf16>, vector<16x128xf32> -> vector<16x128xf32>
    %c0_3 = arith.constant 0 : index
    %c0_4 = arith.constant 0 : index
    %3 = vector.load %arg3[%c0_3, %c0_4] : memref<1x128xf32, #tpu.memory_space<vmem>>, vector<1x128xf32>
    %4 = vector.broadcast %3 : vector<1x128xf32> to vector<16x128xf32>
    %5 = arith.addf %2, %4 : vector<16x128xf32>
    %cst_5 = arith.constant 0.000000e+00 : f32
    %6 = vector.broadcast %cst_5 : f32 to vector<16x128xf32>
    %7 = arith.maximumf %5, %6 : vector<16x128xf32>
    %8 = arith.truncf %7 : vector<16x128xf32> to vector<16x128xbf16>
    %c0_6 = arith.constant 0 : index
    %c0_7 = arith.constant 0 : index
    %9 = vector.load %arg4[%c0_6, %c0_7] : memref<128x128xbf16, #tpu.memory_space<vmem>>, vector<128x128xbf16>
    %cst_8 = arith.constant dense<0.000000e+00> : vector<16x128xf32>
    %10 = tpu.matmul %8, %9, %cst_8 {dimension_numbers = #tpu.dot_dimension_numbers<[1], [0], [0], [1], [0, 0, 1, 1], [], []>} : vector<16x128xbf16>, vector<128x128xbf16>, vector<16x128xf32> -> vector<16x128xf32>
    %c0_9 = arith.constant 0 : index
    %c0_10 = arith.constant 0 : index
    %11 = vector.load %arg5[%c0_9, %c0_10] : memref<1x128xf32, #tpu.memory_space<vmem>>, vector<1x128xf32>
    %12 = vector.broadcast %11 : vector<1x128xf32> to vector<16x128xf32>
    %13 = arith.addf %10, %12 : vector<16x128xf32>
    %cst_11 = arith.constant 0.000000e+00 : f32
    %14 = vector.broadcast %cst_11 : f32 to vector<16x128xf32>
    %15 = arith.maximumf %13, %14 : vector<16x128xf32>
    %16 = arith.truncf %15 : vector<16x128xf32> to vector<16x128xbf16>
    %c0_12 = arith.constant 0 : index
    %c0_13 = arith.constant 0 : index
    %17 = vector.load %arg6[%c0_12, %c0_13] : memref<128x128xbf16, #tpu.memory_space<vmem>>, vector<128x128xbf16>
    %cst_14 = arith.constant dense<0.000000e+00> : vector<16x128xf32>
    %18 = tpu.matmul %16, %17, %cst_14 {dimension_numbers = #tpu.dot_dimension_numbers<[1], [0], [0], [1], [0, 0, 1, 1], [], []>} : vector<16x128xbf16>, vector<128x128xbf16>, vector<16x128xf32> -> vector<16x128xf32>
    %c0_15 = arith.constant 0 : index
    %c0_16 = arith.constant 0 : index
    %19 = vector.load %arg7[%c0_15, %c0_16] : memref<1x128xf32, #tpu.memory_space<vmem>>, vector<1x128xf32>
    %20 = vector.broadcast %19 : vector<1x128xf32> to vector<16x128xf32>
    %21 = arith.addf %18, %20 : vector<16x128xf32>
    %22 = arith.truncf %21 : vector<16x128xf32> to vector<16x128xbf16>
    %c0_17 = arith.constant 0 : index
    %c0_18 = arith.constant 0 : index
    %23 = vector.load %arg10[%c0_17, %c0_18] : memref<16x128xbf16, #tpu.memory_space<vmem>>, vector<16x128xbf16>
    tpu.vector_store %arg10[%c0_17, %c0_18], %22 {strides = array<i32>} : memref<16x128xbf16, #tpu.memory_space<vmem>>, vector<16x128xbf16>,
    %c0_19 = arith.constant 0 : index
    %c0_20 = arith.constant 0 : index
    %24 = vector.load %arg8[%c0_19, %c0_20] : memref<128x128xbf16, #tpu.memory_space<vmem>>, vector<128x128xbf16>
    %cst_21 = arith.constant dense<0.000000e+00> : vector<16x128xf32>
    %25 = tpu.matmul %22, %24, %cst_21 {dimension_numbers = #tpu.dot_dimension_numbers<[1], [0], [0], [1], [0, 0, 1, 1], [], []>} : vector<16x128xbf16>, vector<128x128xbf16>, vector<16x128xf32> -> vector<16x128xf32>
    %c0_22 = arith.constant 0 : index
    %c0_23 = arith.constant 0 : index
    %26 = vector.load %arg9[%c0_22, %c0_23] : memref<1x128xf32, #tpu.memory_space<vmem>>, vector<1x128xf32>
    %27 = vector.broadcast %26 : vector<1x128xf32> to vector<16x128xf32>
    %28 = arith.addf %25, %27 : vector<16x128xf32>
    %c0_24 = arith.constant 0 : index
    %c0_25 = arith.constant 0 : index
    %29 = vector.load %arg11[%c0_24, %c0_25] : memref<16x128xf32, #tpu.memory_space<vmem>>, vector<16x128xf32>
    tpu.vector_store %arg11[%c0_24, %c0_25], %28 {strides = array<i32>} : memref<16x128xf32, #tpu.memory_space<vmem>>, vector<16x128xf32>,
    return
  }
  func.func @transform_0(%arg0: i32) -> (i32, i32) {
    %c0_i32 = arith.constant 0 : i32
    %c0_i32_0 = arith.constant 0 : i32
    return %arg0, %c0_i32 : i32, i32
  }
  func.func @transform_1(%arg0: i32) -> (i32, i32) {
    %c0_i32 = arith.constant 0 : i32
    %c0_i32_0 = arith.constant 0 : i32
    %c0_i32_1 = arith.constant 0 : i32
    return %c0_i32, %c0_i32_0 : i32, i32
  }
  func.func @transform_2(%arg0: i32) -> (i32, i32) {
    %c0_i32 = arith.constant 0 : i32
    %c0_i32_0 = arith.constant 0 : i32
    %c0_i32_1 = arith.constant 0 : i32
    return %c0_i32, %c0_i32_0 : i32, i32
  }
  func.func @transform_3(%arg0: i32) -> (i32, i32) {
    %c0_i32 = arith.constant 0 : i32
    %c0_i32_0 = arith.constant 0 : i32
    %c0_i32_1 = arith.constant 0 : i32
    return %c0_i32, %c0_i32_0 : i32, i32
  }
  func.func @transform_4(%arg0: i32) -> (i32, i32) {
    %c0_i32 = arith.constant 0 : i32
    %c0_i32_0 = arith.constant 0 : i32
    %c0_i32_1 = arith.constant 0 : i32
    return %c0_i32, %c0_i32_0 : i32, i32
  }
  func.func @transform_5(%arg0: i32) -> (i32, i32) {
    %c0_i32 = arith.constant 0 : i32
    %c0_i32_0 = arith.constant 0 : i32
    %c0_i32_1 = arith.constant 0 : i32
    return %c0_i32, %c0_i32_0 : i32, i32
  }
  func.func @transform_6(%arg0: i32) -> (i32, i32) {
    %c0_i32 = arith.constant 0 : i32
    %c0_i32_0 = arith.constant 0 : i32
    %c0_i32_1 = arith.constant 0 : i32
    return %c0_i32, %c0_i32_0 : i32, i32
  }
  func.func @transform_7(%arg0: i32) -> (i32, i32) {
    %c0_i32 = arith.constant 0 : i32
    %c0_i32_0 = arith.constant 0 : i32
    %c0_i32_1 = arith.constant 0 : i32
    return %c0_i32, %c0_i32_0 : i32, i32
  }
  func.func @transform_8(%arg0: i32) -> (i32, i32) {
    %c0_i32 = arith.constant 0 : i32
    %c0_i32_0 = arith.constant 0 : i32
    %c0_i32_1 = arith.constant 0 : i32
    return %c0_i32, %c0_i32_0 : i32, i32
  }
  func.func @transform_9(%arg0: i32) -> (i32, i32) {
    %c0_i32 = arith.constant 0 : i32
    %c0_i32_0 = arith.constant 0 : i32
    return %arg0, %c0_i32 : i32, i32
  }
  func.func @transform_10(%arg0: i32) -> (i32, i32) {
    %c0_i32 = arith.constant 0 : i32
    %c0_i32_0 = arith.constant 0 : i32
    return %arg0, %c0_i32 : i32, i32
  }
}

</mosaic_0001>

<llo_original>
// kernel: tpu_custom_call.1
$region0: #{tpu_custom_call.1}
  #allocation0 [shape = 'u32[]', space=smem, size = 0x4, offset = 0x4, fixed_abs, tag = 'smem constant byte address 0x4 - core index']
  #allocation1 [shape = 'u32[72,128]{1,0:T(1,128)}', space=vmem, size = 0x9000, scoped, tag = 'internal scratch']
  %s0 = inlined_call_operand.hbm [shape: bf16[16,128], index: 0, kind: input, shape index: {}]
  %s1 = inlined_call_operand.hbm [shape: bf16[128,128], index: 1, kind: input, shape index: {}]
  %s2 = inlined_call_operand.vmem [shape: f32[1,128], index: 2, kind: input, shape index: {}]
  %s3 = inlined_call_operand.hbm [shape: bf16[128,128], index: 3, kind: input, shape index: {}]
  %s4 = inlined_call_operand.vmem [shape: f32[1,128], index: 4, kind: input, shape index: {}]
  %s5 = inlined_call_operand.hbm [shape: bf16[128,128], index: 5, kind: input, shape index: {}]
  %s6 = inlined_call_operand.vmem [shape: f32[1,128], index: 6, kind: input, shape index: {}]
  %s7 = inlined_call_operand.hbm [shape: bf16[128,128], index: 7, kind: input, shape index: {}]
  %s8 = inlined_call_operand.vmem [shape: f32[1,128], index: 8, kind: input, shape index: {}]
  %s9 = inlined_call_operand.hbm [shape: bf16[16,128], index: 9, kind: output, shape index: {0}]
  %s10 = inlined_call_operand.hbm [shape: f32[16,128], index: 10, kind: output, shape index: {1}]
  %11 = xla_tuple %s9, %s10
  %s12 = sld [smem:[#allocation0]]
  $region74: #{tpu_custom_call.1} parent=0
    _
  %s14 = ssub.s32 1, %s12
  %s15 = scalar_select 0, %s14, %s12
  $region1: #{tpu_custom_call.1} parent=0
    #allocation2 [shape = 'u8[4096]{0}', space=vmem, size = 0x1000, scoped, tag = 'input window, operand 0, single buffered']
    #allocation3 [shape = 's32[1]{0}', space=sflag, size = 0x4, scoped, tag = 'scoped memory for tpu_custom_call.1']
    #allocation4 [shape = 's32[1]{0}', space=sflag, size = 0x4, scoped, tag = 'scoped memory for tpu_custom_call.1']
    #allocation5 [shape = 'u8[32768]{0}', space=vmem, size = 0x8000, scoped, tag = 'input window, operand 1, single buffered']
    #allocation6 [shape = 's32[1]{0}', space=sflag, size = 0x4, scoped, tag = 'scoped memory for tpu_custom_call.1']
    #allocation7 [shape = 'u8[32768]{0}', space=vmem, size = 0x8000, scoped, tag = 'input window, operand 3, single buffered']
    #allocation8 [shape = 'u8[32768]{0}', space=vmem, size = 0x8000, scoped, tag = 'input window, operand 5, single buffered']
    #allocation9 [shape = 's32[1]{0}', space=sflag, size = 0x4, scoped, tag = 'scoped memory for tpu_custom_call.1']
    #allocation10 [shape = 'u8[32768]{0}', space=vmem, size = 0x8000, scoped, tag = 'input window, operand 7, single buffered']
    #allocation11 [shape = 'u8[4096]{0}', space=vmem, size = 0x1000, scoped, tag = 'output window, operand 0, single buffered']
    #allocation12 [shape = 'u8[8192]{0}', space=vmem, size = 0x2000, scoped, tag = 'output window, operand 1, single buffered']
    #allocation13 [shape = 's32[1]{0}', space=sflag, size = 0x4, scoped, tag = 'scoped memory for tpu_custom_call.1']
    %16 = vsyncpa [#allocation3], 0
    %17 = vsyncpa [#allocation6], 0
    %18 = vsyncpa [#allocation9], 0
    %19 = vsyncpa [#allocation4], 0
    %20 = vsyncpa [#allocation13], 0
    // Predicated region
    $region2: #{tpu_custom_call.1} parent=1 // pred_check
      _
    $region3: #{tpu_custom_call.1} parent=1 // pred_check_branch
      %22 = sbr.rel (0) target = $region5
    $region4: #{tpu_custom_call.1} parent=1 // pred_region
      %24 = vsyncadd [#allocation3], 0
      %s25 = sshll.u32 %s0, 4
      %s26 = int_to_ptr.hbm [resolvable:$true] %s25
      %s27 = sshll.u32 [#allocation2], 4
      %s28 = int_to_ptr.vmem [resolvable:$true] %s27
      %33 = dma.hbm_to_vmem [thread:$0]  %s26, 128, %s28, [#allocation3], 64, 64, 4
    $region5: #{tpu_custom_call.1} parent=1 // pred_fallthru
      _
    // Predicated region
    $region6: #{tpu_custom_call.1} parent=1 // pred_check
      _
    $region7: #{tpu_custom_call.1} parent=1 // pred_check_branch
      %35 = sbr.rel (0) target = $region9
    $region8: #{tpu_custom_call.1} parent=1 // pred_region
      %37 = vsyncadd [#allocation6], 0
      %s38 = sshll.u32 %s1, 4
      %s39 = int_to_ptr.hbm [resolvable:$true] %s38
      %s40 = sshll.u32 [#allocation5], 4
      %s41 = int_to_ptr.vmem [resolvable:$true] %s40
      %46 = dma.hbm_to_vmem [thread:$0]  %s39, 1024, %s41, [#allocation6], 64, 64, 4
    $region9: #{tpu_custom_call.1} parent=1 // pred_fallthru
      _
    // Predicated region
    $region10: #{tpu_custom_call.1} parent=1 // pred_check
      _
    $region11: #{tpu_custom_call.1} parent=1 // pred_check_branch
      %48 = sbr.rel (0) target = $region13
    $region12: #{tpu_custom_call.1} parent=1 // pred_region
      _
    $region13: #{tpu_custom_call.1} parent=1 // pred_fallthru
      _
    // Predicated region
    $region14: #{tpu_custom_call.1} parent=1 // pred_check
      _
    $region15: #{tpu_custom_call.1} parent=1 // pred_check_branch
      %50 = sbr.rel (0) target = $region17
    $region16: #{tpu_custom_call.1} parent=1 // pred_region
      %52 = vsyncadd [#allocation6], 0
      %s53 = sshll.u32 %s3, 4
      %s54 = int_to_ptr.hbm [resolvable:$true] %s53
      %s55 = sshll.u32 [#allocation7], 4
      %s56 = int_to_ptr.vmem [resolvable:$true] %s55
      %61 = dma.hbm_to_vmem [thread:$0]  %s54, 1024, %s56, [#allocation6], 64, 64, 4
    $region17: #{tpu_custom_call.1} parent=1 // pred_fallthru
      _
    // Predicated region
    $region18: #{tpu_custom_call.1} parent=1 // pred_check
      _
    $region19: #{tpu_custom_call.1} parent=1 // pred_check_branch
      %63 = sbr.rel (0) target = $region21
    $region20: #{tpu_custom_call.1} parent=1 // pred_region
      _
    $region21: #{tpu_custom_call.1} parent=1 // pred_fallthru
      _
    // Predicated region
    $region22: #{tpu_custom_call.1} parent=1 // pred_check
      _
    $region23: #{tpu_custom_call.1} parent=1 // pred_check_branch
      %65 = sbr.rel (0) target = $region25
    $region24: #{tpu_custom_call.1} parent=1 // pred_region
      %67 = vsyncadd [#allocation9], 0
      %s68 = sshll.u32 %s5, 4
      %s69 = int_to_ptr.hbm [resolvable:$true] %s68
      %s70 = sshll.u32 [#allocation8], 4
      %s71 = int_to_ptr.vmem [resolvable:$true] %s70
      %76 = dma.hbm_to_vmem [thread:$0]  %s69, 1024, %s71, [#allocation9], 64, 64, 4
    $region25: #{tpu_custom_call.1} parent=1 // pred_fallthru
      _
    // Predicated region
    $region26: #{tpu_custom_call.1} parent=1 // pred_check
      _
    $region27: #{tpu_custom_call.1} parent=1 // pred_check_branch
      %78 = sbr.rel (0) target = $region29
    $region28: #{tpu_custom_call.1} parent=1 // pred_region
      _
    $region29: #{tpu_custom_call.1} parent=1 // pred_fallthru
      _
    // Predicated region
    $region30: #{tpu_custom_call.1} parent=1 // pred_check
      _
    $region31: #{tpu_custom_call.1} parent=1 // pred_check_branch
      %80 = sbr.rel (0) target = $region33
    $region32: #{tpu_custom_call.1} parent=1 // pred_region
      %82 = vsyncadd [#allocation9], 0
      %s83 = sshll.u32 %s7, 4
      %s84 = int_to_ptr.hbm [resolvable:$true] %s83
      %s85 = sshll.u32 [#allocation10], 4
      %s86 = int_to_ptr.vmem [resolvable:$true] %s85
      %91 = dma.hbm_to_vmem [thread:$0]  %s84, 1024, %s86, [#allocation9], 64, 64, 4
    $region33: #{tpu_custom_call.1} parent=1 // pred_fallthru
      _
    // Predicated region
    $region34: #{tpu_custom_call.1} parent=1 // pred_check
      _
    $region35: #{tpu_custom_call.1} parent=1 // pred_check_branch
      %93 = sbr.rel (0) target = $region37
    $region36: #{tpu_custom_call.1} parent=1 // pred_region
      _
    $region37: #{tpu_custom_call.1} parent=1 // pred_fallthru
      _
    // Predicated region
    $region38: #{tpu_custom_call.1} parent=1 // pred_check
      _
    $region39: #{tpu_custom_call.1} parent=1 // pred_check_branch
      %95 = sbr.rel (0) target = $region41
    $region40: #{tpu_custom_call.1} parent=1 // pred_region
      %97 = dma.done [#allocation3], 128
    $region41: #{tpu_custom_call.1} parent=1 // pred_fallthru
      _
    // Predicated region
    $region42: #{tpu_custom_call.1} parent=1 // pred_check
      _
    $region43: #{tpu_custom_call.1} parent=1 // pred_check_branch
      %99 = sbr.rel (0) target = $region45
    $region44: #{tpu_custom_call.1} parent=1 // pred_region
      %101 = dma.done [#allocation6], 1024
    $region45: #{tpu_custom_call.1} parent=1 // pred_fallthru
      _
    // Predicated region
    $region46: #{tpu_custom_call.1} parent=1 // pred_check
      _
    $region47: #{tpu_custom_call.1} parent=1 // pred_check_branch
      %103 = sbr.rel (0) target = $region49
    $region48: #{tpu_custom_call.1} parent=1 // pred_region
      %105 = dma.done [#allocation6], 1024
    $region49: #{tpu_custom_call.1} parent=1 // pred_fallthru
      _
    // Predicated region
    $region50: #{tpu_custom_call.1} parent=1 // pred_check
      _
    $region51: #{tpu_custom_call.1} parent=1 // pred_check_branch
      %107 = sbr.rel (0) target = $region53
    $region52: #{tpu_custom_call.1} parent=1 // pred_region
      %109 = dma.done [#allocation9], 1024
    $region53: #{tpu_custom_call.1} parent=1 // pred_fallthru
      _
    // Predicated region
    $region54: #{tpu_custom_call.1} parent=1 // pred_check
      _
    $region55: #{tpu_custom_call.1} parent=1 // pred_check_branch
      %111 = sbr.rel (0) target = $region57
    $region56: #{tpu_custom_call.1} parent=1 // pred_region
      %113 = dma.done [#allocation9], 1024
    $region57: #{tpu_custom_call.1} parent=1 // pred_fallthru
      _
    %v114 = vld [vmem:[#allocation2] sm:$0xf]
    %v115 = vld [vmem:[#allocation2 + $0x4] sm:$0xf]
    %v116 = vld [vmem:[#allocation5] sm:$0xf]
    %v117 = vld [vmem:[#allocation5 + $0x4] sm:$0xf]
    %v118 = vld [vmem:[#allocation5 + $0x8] sm:$0xf]
    %v119 = vld [vmem:[#allocation5 + $0xc] sm:$0xf]
    %v120 = vld [vmem:[#allocation5 + $0x10] sm:$0xf]
    %v121 = vld [vmem:[#allocation5 + $0x14] sm:$0xf]
    %v122 = vld [vmem:[#allocation5 + $0x18] sm:$0xf]
    %v123 = vld [vmem:[#allocation5 + $0x1c] sm:$0xf]
    %v124 = vld [vmem:[#allocation5 + $0x20] sm:$0xf]
    %v125 = vld [vmem:[#allocation5 + $0x24] sm:$0xf]
    %v126 = vld [vmem:[#allocation5 + $0x28] sm:$0xf]
    %v127 = vld [vmem:[#allocation5 + $0x2c] sm:$0xf]
    %v128 = vld [vmem:[#allocation5 + $0x30] sm:$0xf]
    %v129 = vld [vmem:[#allocation5 + $0x34] sm:$0xf]
    %v130 = vld [vmem:[#allocation5 + $0x38] sm:$0xf]
    %v131 = vld [vmem:[#allocation5 + $0x3c] sm:$0xf]
    %v132 = vld [vmem:[%s2] sm:$0x1]
    %v134 = vperm.slane %v132, 0
    %v138 = vunpack.c.l.b16 %v114
    %v139 = vunpack.c.l.b16 %v115
    %v140 = vpack.c.b16 %v139, %v138
    %v158 = vunpack.c.l.b16 %v116
    %v159 = vunpack.c.l.b16 %v117
    %v160 = vunpack.c.l.b16 %v118
    %v161 = vunpack.c.l.b16 %v119
    %v162 = vunpack.c.l.b16 %v120
    %v163 = vunpack.c.l.b16 %v121
    %v164 = vunpack.c.l.b16 %v122
    %v165 = vunpack.c.l.b16 %v123
    %v166 = vunpack.c.l.b16 %v124
    %v167 = vunpack.c.l.b16 %v125
    %v168 = vunpack.c.l.b16 %v126
    %v169 = vunpack.c.l.b16 %v127
    %v170 = vunpack.c.l.b16 %v128
    %v171 = vunpack.c.l.b16 %v129
    %v172 = vunpack.c.l.b16 %v130
    %v173 = vunpack.c.l.b16 %v131
    %v174 = vpack.c.b16 %v159, %v158
    %v175 = vpack.c.b16 %v161, %v160
    %v176 = vpack.c.b16 %v163, %v162
    %v177 = vpack.c.b16 %v165, %v164
    %v178 = vpack.c.b16 %v167, %v166
    %v179 = vpack.c.b16 %v169, %v168
    %v180 = vpack.c.b16 %v171, %v170
    %v181 = vpack.c.b16 %v173, %v172
    %190 = vmatpush.bf16.msra.mxu0 %v181
    %191 = vmatpush.bf16.msra.mxu0 %v180
    %192 = vmatpush.bf16.msra.mxu0 %v179
    %193 = vmatpush.bf16.msra.mxu0 %v178
    %194 = vmatpush.bf16.msra.mxu0 %v177
    %195 = vmatpush.bf16.msra.mxu0 %v176
    %196 = vmatpush.bf16.msra.mxu0 %v175
    %197 = vmatpush.bf16.msra.mxu0 %v174
    %198 = vmatmul.bf16.gmra.mxu0 %v140
    %v199 = vpop.f32.mrf.mxu0
    %v200 = vadd.f32 %v134, %v199
    %v201 = vpop.f32.mrf.mxu0
    %v202 = vadd.f32 %v134, %v201
    %203 = vdwg.mxu0
    %v204 = vmax.f32 %v200, 0.0
    %v205 = vmax.f32 %v202, 0.0
    %v206 = vpack.c.bf16 %v205, %v204
    %v207 = vld [vmem:[#allocation7] sm:$0xf]
    %v208 = vld [vmem:[#allocation7 + $0x4] sm:$0xf]
    %v209 = vld [vmem:[#allocation7 + $0x8] sm:$0xf]
    %v210 = vld [vmem:[#allocation7 + $0xc] sm:$0xf]
    %v211 = vld [vmem:[#allocation7 + $0x10] sm:$0xf]
    %v212 = vld [vmem:[#allocation7 + $0x14] sm:$0xf]
    %v213 = vld [vmem:[#allocation7 + $0x18] sm:$0xf]
    %v214 = vld [vmem:[#allocation7 + $0x1c] sm:$0xf]
    %v215 = vld [vmem:[#allocation7 + $0x20] sm:$0xf]
    %v216 = vld [vmem:[#allocation7 + $0x24] sm:$0xf]
    %v217 = vld [vmem:[#allocation7 + $0x28] sm:$0xf]
    %v218 = vld [vmem:[#allocation7 + $0x2c] sm:$0xf]
    %v219 = vld [vmem:[#allocation7 + $0x30] sm:$0xf]
    %v220 = vld [vmem:[#allocation7 + $0x34] sm:$0xf]
    %v221 = vld [vmem:[#allocation7 + $0x38] sm:$0xf]
    %v222 = vld [vmem:[#allocation7 + $0x3c] sm:$0xf]
    %v223 = vld [vmem:[%s4] sm:$0x1]
    %v225 = vperm.slane %v223, 0
    %v243 = vunpack.c.l.b16 %v207
    %v244 = vunpack.c.l.b16 %v208
    %v245 = vunpack.c.l.b16 %v209
    %v246 = vunpack.c.l.b16 %v210
    %v247 = vunpack.c.l.b16 %v211
    %v248 = vunpack.c.l.b16 %v212
    %v249 = vunpack.c.l.b16 %v213
    %v250 = vunpack.c.l.b16 %v214
    %v251 = vunpack.c.l.b16 %v215
    %v252 = vunpack.c.l.b16 %v216
    %v253 = vunpack.c.l.b16 %v217
    %v254 = vunpack.c.l.b16 %v218
    %v255 = vunpack.c.l.b16 %v219
    %v256 = vunpack.c.l.b16 %v220
    %v257 = vunpack.c.l.b16 %v221
    %v258 = vunpack.c.l.b16 %v222
    %v259 = vpack.c.b16 %v244, %v243
    %v260 = vpack.c.b16 %v246, %v245
    %v261 = vpack.c.b16 %v248, %v247
    %v262 = vpack.c.b16 %v250, %v249
    %v263 = vpack.c.b16 %v252, %v251
    %v264 = vpack.c.b16 %v254, %v253
    %v265 = vpack.c.b16 %v256, %v255
    %v266 = vpack.c.b16 %v258, %v257
    %275 = vmatpush.bf16.msra.mxu0 %v266
    %276 = vmatpush.bf16.msra.mxu0 %v265
    %277 = vmatpush.bf16.msra.mxu0 %v264
    %278 = vmatpush.bf16.msra.mxu0 %v263
    %279 = vmatpush.bf16.msra.mxu0 %v262
    %280 = vmatpush.bf16.msra.mxu0 %v261
    %281 = vmatpush.bf16.msra.mxu0 %v260
    %282 = vmatpush.bf16.msra.mxu0 %v259
    %283 = vmatmul.bf16.gmra.mxu0 %v206
    %v284 = vpop.f32.mrf.mxu0
    %v285 = vadd.f32 %v225, %v284
    %v286 = vpop.f32.mrf.mxu0
    %v287 = vadd.f32 %v225, %v286
    %288 = vdwg.mxu0
    %v289 = vmax.f32 %v285, 0.0
    %v290 = vmax.f32 %v287, 0.0
    %v291 = vpack.c.bf16 %v290, %v289
    %v292 = vld [vmem:[#allocation8] sm:$0xf]
    %v293 = vld [vmem:[#allocation8 + $0x4] sm:$0xf]
    %v294 = vld [vmem:[#allocation8 + $0x8] sm:$0xf]
    %v295 = vld [vmem:[#allocation8 + $0xc] sm:$0xf]
    %v296 = vld [vmem:[#allocation8 + $0x10] sm:$0xf]
    %v297 = vld [vmem:[#allocation8 + $0x14] sm:$0xf]
    %v298 = vld [vmem:[#allocation8 + $0x18] sm:$0xf]
    %v299 = vld [vmem:[#allocation8 + $0x1c] sm:$0xf]
    %v300 = vld [vmem:[#allocation8 + $0x20] sm:$0xf]
    %v301 = vld [vmem:[#allocation8 + $0x24] sm:$0xf]
    %v302 = vld [vmem:[#allocation8 + $0x28] sm:$0xf]
    %v303 = vld [vmem:[#allocation8 + $0x2c] sm:$0xf]
    %v304 = vld [vmem:[#allocation8 + $0x30] sm:$0xf]
    %v305 = vld [vmem:[#allocation8 + $0x34] sm:$0xf]
    %v306 = vld [vmem:[#allocation8 + $0x38] sm:$0xf]
    %v307 = vld [vmem:[#allocation8 + $0x3c] sm:$0xf]
    %v308 = vld [vmem:[%s6] sm:$0x1]
    %v310 = vperm.slane %v308, 0
    %v328 = vunpack.c.l.b16 %v292
    %v329 = vunpack.c.l.b16 %v293
    %v330 = vunpack.c.l.b16 %v294
    %v331 = vunpack.c.l.b16 %v295
    %v332 = vunpack.c.l.b16 %v296
    %v333 = vunpack.c.l.b16 %v297
    %v334 = vunpack.c.l.b16 %v298
    %v335 = vunpack.c.l.b16 %v299
    %v336 = vunpack.c.l.b16 %v300
    %v337 = vunpack.c.l.b16 %v301
    %v338 = vunpack.c.l.b16 %v302
    %v339 = vunpack.c.l.b16 %v303
    %v340 = vunpack.c.l.b16 %v304
    %v341 = vunpack.c.l.b16 %v305
    %v342 = vunpack.c.l.b16 %v306
    %v343 = vunpack.c.l.b16 %v307
    %v344 = vpack.c.b16 %v329, %v328
    %v345 = vpack.c.b16 %v331, %v330
    %v346 = vpack.c.b16 %v333, %v332
    %v347 = vpack.c.b16 %v335, %v334
    %v348 = vpack.c.b16 %v337, %v336
    %v349 = vpack.c.b16 %v339, %v338
    %v350 = vpack.c.b16 %v341, %v340
    %v351 = vpack.c.b16 %v343, %v342
    %360 = vmatpush.bf16.msra.mxu0 %v351
    %361 = vmatpush.bf16.msra.mxu0 %v350
    %362 = vmatpush.bf16.msra.mxu0 %v349
    %363 = vmatpush.bf16.msra.mxu0 %v348
    %364 = vmatpush.bf16.msra.mxu0 %v347
    %365 = vmatpush.bf16.msra.mxu0 %v346
    %366 = vmatpush.bf16.msra.mxu0 %v345
    %367 = vmatpush.bf16.msra.mxu0 %v344
    %368 = vmatmul.bf16.gmra.mxu0 %v291
    %v369 = vpop.f32.mrf.mxu0
    %v370 = vadd.f32 %v310, %v369
    %v371 = vpop.f32.mrf.mxu0
    %v372 = vadd.f32 %v310, %v371
    %373 = vdwg.mxu0
    %v374 = vpack.c.bf16 %v370, %v370
    %v375 = vpack.c.bf16 %v372, %v372
    %376 = vst [vmem:[#allocation11] sm:$0xf] %v374
    %377 = vst [vmem:[#allocation11 + $0x4] sm:$0xf] %v375
    %v378 = vld [vmem:[#allocation10] sm:$0xf]
    %v379 = vld [vmem:[#allocation10 + $0x4] sm:$0xf]
    %v380 = vld [vmem:[#allocation10 + $0x8] sm:$0xf]
    %v381 = vld [vmem:[#allocation10 + $0xc] sm:$0xf]
    %v382 = vld [vmem:[#allocation10 + $0x10] sm:$0xf]
    %v383 = vld [vmem:[#allocation10 + $0x14] sm:$0xf]
    %v384 = vld [vmem:[#allocation10 + $0x18] sm:$0xf]
    %v385 = vld [vmem:[#allocation10 + $0x1c] sm:$0xf]
    %v386 = vld [vmem:[#allocation10 + $0x20] sm:$0xf]
    %v387 = vld [vmem:[#allocation10 + $0x24] sm:$0xf]
    %v388 = vld [vmem:[#allocation10 + $0x28] sm:$0xf]
    %v389 = vld [vmem:[#allocation10 + $0x2c] sm:$0xf]
    %v390 = vld [vmem:[#allocation10 + $0x30] sm:$0xf]
    %v391 = vld [vmem:[#allocation10 + $0x34] sm:$0xf]
    %v392 = vld [vmem:[#allocation10 + $0x38] sm:$0xf]
    %v393 = vld [vmem:[#allocation10 + $0x3c] sm:$0xf]
    %v394 = vld [vmem:[%s8] sm:$0x1]
    %v396 = vperm.slane %v394, 0
    %v400 = vunpack.c.l.b16 %v374
    %v401 = vunpack.c.l.b16 %v375
    %v402 = vpack.c.b16 %v401, %v400
    %v420 = vunpack.c.l.b16 %v378
    %v421 = vunpack.c.l.b16 %v379
    %v422 = vunpack.c.l.b16 %v380
    %v423 = vunpack.c.l.b16 %v381
    %v424 = vunpack.c.l.b16 %v382
    %v425 = vunpack.c.l.b16 %v383
    %v426 = vunpack.c.l.b16 %v384
    %v427 = vunpack.c.l.b16 %v385
    %v428 = vunpack.c.l.b16 %v386
    %v429 = vunpack.c.l.b16 %v387
    %v430 = vunpack.c.l.b16 %v388
    %v431 = vunpack.c.l.b16 %v389
    %v432 = vunpack.c.l.b16 %v390
    %v433 = vunpack.c.l.b16 %v391
    %v434 = vunpack.c.l.b16 %v392
    %v435 = vunpack.c.l.b16 %v393
    %v436 = vpack.c.b16 %v421, %v420
    %v437 = vpack.c.b16 %v423, %v422
    %v438 = vpack.c.b16 %v425, %v424
    %v439 = vpack.c.b16 %v427, %v426
    %v440 = vpack.c.b16 %v429, %v428
    %v441 = vpack.c.b16 %v431, %v430
    %v442 = vpack.c.b16 %v433, %v432
    %v443 = vpack.c.b16 %v435, %v434
    %452 = vmatpush.bf16.msra.mxu0 %v443
    %453 = vmatpush.bf16.msra.mxu0 %v442
    %454 = vmatpush.bf16.msra.mxu0 %v441
    %455 = vmatpush.bf16.msra.mxu0 %v440
    %456 = vmatpush.bf16.msra.mxu0 %v439
    %457 = vmatpush.bf16.msra.mxu0 %v438
    %458 = vmatpush.bf16.msra.mxu0 %v437
    %459 = vmatpush.bf16.msra.mxu0 %v436
    %460 = vmatmul.bf16.gmra.mxu0 %v402
    %v461 = vpop.f32.mrf.mxu0
    %v462 = vadd.f32 %v396, %v461
    %v463 = vpop.f32.mrf.mxu0
    %v464 = vadd.f32 %v396, %v463
    %465 = vdwg.mxu0
    %466 = vst [vmem:[#allocation12] sm:$0xff] %v462
    %467 = vst [vmem:[#allocation12 + $0x8] sm:$0xff] %v464
    // Predicated region
    $region58: #{tpu_custom_call.1} parent=1 // pred_check
      _
    $region59: #{tpu_custom_call.1} parent=1 // pred_check_branch
      %469 = sbr.rel (0) target = $region61
    $region60: #{tpu_custom_call.1} parent=1 // pred_region
      %471 = vsyncadd [#allocation4], 0
      %s472 = sshll.u32 [#allocation11], 4
      %s473 = int_to_ptr.vmem [resolvable:$true] %s472
      %s474 = sshll.u32 %s9, 4
      %s475 = int_to_ptr.hbm [resolvable:$true] %s474
      %480 = dma.vmem_to_hbm [thread:$0]  %s473, 128, %s475, [#allocation4], 64, 64, 4
    $region61: #{tpu_custom_call.1} parent=1 // pred_fallthru
      _
    // Predicated region
    $region62: #{tpu_custom_call.1} parent=1 // pred_check
      _
    $region63: #{tpu_custom_call.1} parent=1 // pred_check_branch
      %482 = sbr.rel (0) target = $region65
    $region64: #{tpu_custom_call.1} parent=1 // pred_region
      %484 = vsyncadd [#allocation13], 0
      %s485 = sshll.u32 [#allocation12], 4
      %s486 = int_to_ptr.vmem [resolvable:$true] %s485
      %s487 = sshll.u32 %s10, 4
      %s488 = int_to_ptr.hbm [resolvable:$true] %s487
      %493 = dma.vmem_to_hbm [thread:$0]  %s486, 256, %s488, [#allocation13], 128, 128, 8
    $region65: #{tpu_custom_call.1} parent=1 // pred_fallthru
      _
    // Predicated region
    $region66: #{tpu_custom_call.1} parent=1 // pred_check
      _
    $region67: #{tpu_custom_call.1} parent=1 // pred_check_branch
      %495 = sbr.rel (0) target = $region69
    $region68: #{tpu_custom_call.1} parent=1 // pred_region
      %497 = dma.done [#allocation4], 128
    $region69: #{tpu_custom_call.1} parent=1 // pred_fallthru
      _
    // Predicated region
    $region70: #{tpu_custom_call.1} parent=1 // pred_check
      _
    $region71: #{tpu_custom_call.1} parent=1 // pred_check_branch
      %499 = sbr.rel (0) target = $region73
    $region72: #{tpu_custom_call.1} parent=1 // pred_region
      %501 = dma.done [#allocation13], 256
    $region73: #{tpu_custom_call.1} parent=1 // pred_fallthru
      _
    %502 = vsyncpa [#allocation3], 1
    %503 = vsyncpa [#allocation6], 1
    %504 = vsyncpa [#allocation9], 1
    %505 = vsyncpa [#allocation4], 1
    %506 = vsyncpa [#allocation13], 1

</llo_original>
